<compile_context>
chip_gen: v5e
topology: v5e:2x2
jax: 0.10.0
libtpu: 0.0.40
codegen_flags: <defaults>
</compile_context>

<pallas_src>
import functools
import math

import jax
import jax.numpy as jnp
from jax.experimental import pallas as pl
from jax.experimental.pallas import tpu as pltpu


_MAX_TILE_M = 512   # rows per grid step; amortizes ~0.35us per-step overhead
_LN_EPS = 1e-5      # matches PyTorch nn.LayerNorm default
_LANE = 128


def _round_up(x, m):
    return ((x + m - 1) // m) * m


def _tensorcores_per_chip():
    """Best-effort TensorCore-per-chip detection (v7x = 2, v5e/v6e = 1)."""
    try:
        kind = (getattr(jax.devices()[0], "device_kind", "") or "").lower()
        if "v7" in kind or "7x" in kind:
            return 2
    except Exception:
        pass
    return 1


def _choose_tile_m(rows, max_hidden, num_cores):
    """Adaptive row tile (multiple of 8).

    * single TC: don't split a problem that fits one tile (grid is a serial loop).
    * megacore: >= 2 programs per core so x-tile DMA overlaps compute.
    * cap shrinks for large hidden dims (intermediate (tile_m x hidden) f32+bf16
      buffers squeeze VMEM, worst on v7x's 64 MiB/TC).
    """
    cap = 256 if max_hidden >= 2048 else _MAX_TILE_M
    p8 = _round_up(max(rows, 1), 8)
    min_programs = 1 if num_cores <= 1 else 2 * num_cores
    n_programs = max(min_programs, pl.cdiv(p8, cap))
    tile = _round_up(pl.cdiv(p8, n_programs), 8)
    return max(8, min(cap, tile))


def _vmem_limit_bytes(tile_m, layer_dims, w_bytes, packed_bytes, out_itemsize):
    in_dim, out_pad = layer_dims[0], layer_dims[-1]
    max_h = max(layer_dims[1:])
    budget = (
        2 * tile_m * in_dim * 4                 # double-buffered x tile (f32)
        + 2 * tile_m * out_pad * out_itemsize   # double-buffered out tile
        + w_bytes + packed_bytes                # resident bf16 weights + packed bias block
        + 2 * tile_m * max_h * (4 + 2)          # f32 + bf16 inter-layer activations (x2 margin)
        + (4 << 20)                             # compiler scratch / spill headroom
    )
    # 56 MiB cap keeps us below v7x's 64 MiB/TC physical ceiling; 32 MiB floor
    # matches/raises the scoped defaults on v5e/v6e.
    return int(min(max(budget, 32 << 20), 56 << 20))


# ----------------------------------------------------------------------------
# Fused MLP kernel
# ----------------------------------------------------------------------------
def _make_mlp_kernel(layer_dims, out_dim_real, use_layer_norm):
    """layer_dims = lane-padded [in, h, ..., h, out_pad]; n linears = len-1."""
    n_lin = len(layer_dims) - 1
    out_pad = layer_dims[-1]

    def kernel(x_ref, *refs):
        w_refs = refs[:n_lin]          # bf16 weights, fully resident in VMEM
        p_ref = refs[n_lin]            # packed f32 biases (+ gamma, beta)
        o_ref = refs[n_lin + 1]

        h = x_ref[...].astype(jnp.bfloat16)          # MXU operands in bf16
        z = None
        for l in range(n_lin):
            d_out = layer_dims[l + 1]
            b = p_ref[l:l + 1, :d_out]               # (1, d_out) f32 bias
            z = jnp.dot(h, w_refs[l][...],
                        preferred_element_type=jnp.float32) + b
            if l < n_lin - 1:
                # SiLU = z*sigmoid(z) = 0.5*z*(1+tanh(z/2)): one EUP op per element
                # instead of exp + reciprocal (sigmoid).
                z = z * (0.5 * (jnp.tanh(0.5 * z) + 1.0))
                h = z.astype(jnp.bfloat16)

        y = z
        if use_layer_norm:
            gamma = p_ref[n_lin:n_lin + 1, :out_pad]
            beta = p_ref[n_lin + 1:n_lin + 2, :out_pad]
            # Columns >= out_dim_real of y are exactly zero (zero-padded W/b), so
            # plain sums over the padded width divided by the REAL width give the
            # exact per-row statistics of the unpadded output.
            inv_n = 1.0 / out_dim_real
            mean = jnp.sum(y, axis=-1, keepdims=True) * inv_n
            ex2 = jnp.sum(y * y, axis=-1, keepdims=True) * inv_n
            var = ex2 - mean * mean
            y = (y - mean) * jax.lax.rsqrt(var + _LN_EPS)
            y = y * gamma + beta     # gamma/beta zero-padded -> padded cols = 0

        o_ref[...] = y.astype(o_ref.dtype)           # (tile_m, out_pad): lane-dense store

    return kernel


# ----------------------------------------------------------------------------
# One-time parameter preparation (call OUTSIDE the jitted forward)
# ----------------------------------------------------------------------------
def prepare_mlp_params(weights, biases, gamma=None, beta=None, *, use_layer_norm=True):
    """Cast weights to bf16 once, pad the final layer to a lane-dense multiple of
    128 output columns, and pack biases (+ LN affine) into one resident f32 block.

    weights[l]: [in_l, out_l] (PyTorch nn.Linear weight transposed); biases[l]: [out_l].
    Returns (bf16_weights_tuple, packed_f32_block).
    """
    n_lin = len(weights)
    out_dim = weights[-1].shape[1]
    weights = list(weights)
    biases = list(biases)

    if use_layer_norm:
        if gamma is None:
            gamma = jnp.ones((out_dim,), jnp.float32)
        if beta is None:
            beta = jnp.zeros((out_dim,), jnp.float32)

    # Lane-dense final store: zero-pad the last weight / bias / gamma / beta to a
    # multiple of 128 columns; mlp_forward slices the padding away.
    out_pad = _round_up(out_dim, _LANE)
    if out_pad != out_dim:
        pad = out_pad - out_dim
        weights[-1] = jnp.pad(weights[-1], ((0, 0), (0, pad)))
        biases[-1] = jnp.pad(biases[-1], (0, pad))
        if use_layer_norm:
            gamma = jnp.pad(gamma, (0, pad))
            beta = jnp.pad(beta, (0, pad))

    seg_w = _round_up(max(w.shape[1] for w in weights), _LANE)
    segs = [jnp.pad(b.astype(jnp.float32), (0, seg_w - b.shape[0])) for b in biases]
    if use_layer_norm:
        segs.append(jnp.pad(gamma.astype(jnp.float32), (0, seg_w - gamma.shape[0])))
        segs.append(jnp.pad(beta.astype(jnp.float32), (0, seg_w - beta.shape[0])))
    packed = jnp.stack(segs, axis=0)

    w_bf16 = tuple(w.astype(jnp.bfloat16) for w in weights)
    return w_bf16, packed


# ----------------------------------------------------------------------------
# Wrapper
# ----------------------------------------------------------------------------
def mlp_forward(x, weights, packed, *, out_dim, use_layer_norm=True, out_dtype=None):
    """y = [LayerNorm](Linear_out(SiLU(... SiLU(Linear_in(x)) ...)))

    `weights`/`packed` must come from prepare_mlp_params (bf16, lane-padded).
    x: [..., in_dim] -> [..., out_dim].
    """
    n_lin = len(weights)
    layer_dims = (weights[0].shape[0],) + tuple(w.shape[1] for w in weights)
    in_dim, out_pad = layer_dims[0], layer_dims[-1]
    out_dtype = out_dtype or x.dtype

    lead_shape = x.shape[:-1]
    rows = int(math.prod(lead_shape)) if lead_shape else 1
    xf = x.reshape(rows, in_dim)

    num_cores = _tensorcores_per_chip()
    tile_m = _choose_tile_m(rows, max(layer_dims[1:]), num_cores)
    padded_rows = _round_up(rows, tile_m)
    if padded_rows != rows:
        # Padded rows flow through LayerNorm as (0 - 0)*rsqrt(eps) + beta: finite,
        # and sliced away below.
        # TODO(synk): for very large ragged inputs, mask the tail in-kernel instead of
        # materializing a padded copy of x (extra HBM pass).
        xf = jnp.pad(xf, ((0, padded_rows - rows), (0, 0)))

    grid = padded_rows // tile_m
    kernel = _make_mlp_kernel(layer_dims, out_dim, use_layer_norm)

    w_bytes = sum(int(w.size) * w.dtype.itemsize for w in weights)
    packed_bytes = int(packed.size) * packed.dtype.itemsize
    vmem_limit = _vmem_limit_bytes(tile_m, layer_dims, w_bytes, packed_bytes,
                                   jnp.dtype(out_dtype).itemsize)

    def call(buffered):
        def resident(shape):
            # Constant block index -> keep resident; single-buffer to avoid doubling
            # the weight footprint in VMEM (biggest help on v7x's 64 MiB/TC).
            if buffered:
                return pl.BlockSpec(shape, lambda i: (0, 0),
                                    pipeline_mode=pl.Buffered(1))
            return pl.BlockSpec(shape, lambda i: (0, 0))

        in_specs = [pl.BlockSpec((tile_m, in_dim), lambda i: (i, 0))]
        in_specs += [resident(w.shape) for w in weights]
        in_specs.append(resident(packed.shape))

        return pl.pallas_call(
            kernel,
            out_shape=jax.ShapeDtypeStruct((padded_rows, out_pad), out_dtype),
            grid_spec=pltpu.PrefetchScalarGridSpec(
                num_scalar_prefetch=0,
                grid=(grid,),
                in_specs=in_specs,
                out_specs=pl.BlockSpec((tile_m, out_pad), lambda i: (i, 0)),
            ),
            compiler_params=pltpu.CompilerParams(
                dimension_semantics=("parallel",),
                vmem_limit_bytes=vmem_limit),
        )(xf, *weights, packed)

    try:
        out = call(buffered=True)
    except Exception:
        # Fallback for JAX versions where BlockSpec.pipeline_mode is unsupported.
        out = call(buffered=False)

    return out[:rows, :out_dim].reshape(*lead_shape, out_dim)


# ----------------------------------------------------------------------------
# Pure-JAX reference (bf16-matmul-matched, for correctness check)
# ----------------------------------------------------------------------------
def mlp_reference(x, weights, biases, gamma=None, beta=None, *, use_layer_norm=True):
    h = x.astype(jnp.bfloat16)
    z = None
    for l, (w, b) in enumerate(zip(weights, biases)):
        z = jnp.dot(h, w.astype(jnp.bfloat16),
                    preferred_element_type=jnp.float32) + b
        if l < len(weights) - 1:
            z = z * jax.nn.sigmoid(z)
            h = z.astype(jnp.bfloat16)
    y = z
    if use_layer_norm:
        mean = jnp.mean(y, axis=-1, keepdims=True)
        var = jnp.mean((y - mean) ** 2, axis=-1, keepdims=True)
        y = (y - mean) * jax.lax.rsqrt(var + _LN_EPS)
        y = y * gamma + beta
    return y.astype(x.dtype)


# ----------------------------------------------------------------------------
# Parameter init (mimicking PyTorch nn.Linear / nn.LayerNorm defaults)
# ----------------------------------------------------------------------------
def init_mlp_params(key, in_dim, out_dim, hidden_dim, hidden_layers, use_layer_norm=True):
    dims = [in_dim] + [hidden_dim] * hidden_layers + [out_dim]
    weights, biases = [], []
    for i in range(len(dims) - 1):
        key, k = jax.random.split(key)
        kw, kb = jax.random.split(k)
        bound = 1.0 / math.sqrt(dims[i])
        weights.append(jax.random.uniform(kw, (dims[i], dims[i + 1]),
                                          jnp.float32, -bound, bound))
        biases.append(jax.random.uniform(kb, (dims[i + 1],),
                                         jnp.float32, -bound, bound))
    gamma = jnp.ones((out_dim,), jnp.float32) if use_layer_norm else None
    beta = jnp.zeros((out_dim,), jnp.float32) if use_layer_norm else None
    return weights, biases, gamma, beta


# ----------------------------------------------------------------------------
# Demo
# ----------------------------------------------------------------------------
if __name__ == "__main__":
    key = jax.random.PRNGKey(0)

    B, S = 2, 64                       # 128 rows
    in_dim, hidden_dim, out_dim = 32, 64, 32
    hidden_layers = 2                  # -> 3 linears: 32->64, 64->64, 64->32

    k_x, k_p = jax.random.split(key)
    x = jax.random.normal(k_x, (B, S, in_dim), jnp.float32)
    weights, biases, gamma, beta = init_mlp_params(
        k_p, in_dim, out_dim, hidden_dim, hidden_layers, use_layer_norm=True)

    # One-time prep OUTSIDE jit: bf16 weights, lane-dense padding, packed biases.
    w_prep, packed = prepare_mlp_params(weights, biases, gamma, beta,
                                        use_layer_norm=True)

    fwd = jax.jit(functools.partial(mlp_forward, out_dim=out_dim,
                                    use_layer_norm=True))
    y = fwd(x, w_prep, packed)
    jax.block_until_ready(y)

    y_ref = mlp_reference(x, weights, biases, gamma, beta, use_layer_norm=True)

    assert y.shape == (B, S, out_dim)
    assert bool(jnp.all(jnp.isfinite(y)))
    assert bool(jnp.allclose(y, y_ref, atol=1e-2, rtol=1e-2)), \
        float(jnp.max(jnp.abs(y - y_ref)))
    print("KERNEL_OK")
</pallas_src>

<mosaic_0001>
module attributes {stable_mosaic.version = 11 : i64} {
  func.func @kernel(%arg0: i32, %arg1: memref<128x32xf32, #tpu.memory_space<vmem>>, %arg2: memref<32x64xbf16, #tpu.memory_space<vmem>>, %arg3: memref<64x64xbf16, #tpu.memory_space<vmem>>, %arg4: memref<64x128xbf16, #tpu.memory_space<vmem>>, %arg5: memref<5x128xf32, #tpu.memory_space<vmem>>, %arg6: memref<128x128xf32, #tpu.memory_space<vmem>>) attributes {dimension_semantics = [#tpu.dimension_semantics<parallel>], iteration_bounds = array<i64: 1>, scalar_prefetch = 0 : i64, scratch_operands = 0 : i64, tpu.core_type = #tpu.core_type<tc>, window_params = [{transform_indices = @transform_0, window_bounds = array<i64: 128, 32>}, {pipeline_mode = #tpu.pipeline_mode<synchronous>, transform_indices = @transform_1, window_bounds = array<i64: 32, 64>}, {pipeline_mode = #tpu.pipeline_mode<synchronous>, transform_indices = @transform_2, window_bounds = array<i64: 64, 64>}, {pipeline_mode = #tpu.pipeline_mode<synchronous>, transform_indices = @transform_3, window_bounds = array<i64: 64, 128>}, {pipeline_mode = #tpu.pipeline_mode<synchronous>, transform_indices = @transform_4, window_bounds = array<i64: 5, 128>}, {transform_indices = @transform_5, window_bounds = array<i64: 128, 128>}]} {
    %c0 = arith.constant 0 : index
    %c0_0 = arith.constant 0 : index
    %0 = vector.load %arg1[%c0, %c0_0] : memref<128x32xf32, #tpu.memory_space<vmem>>, vector<128x32xf32>
    %1 = arith.truncf %0 : vector<128x32xf32> to vector<128x32xbf16>
    %c0_1 = arith.constant 0 : index
    %c0_2 = arith.constant 0 : index
    %2 = vector.load %arg5[%c0_1, %c0_2] : memref<5x128xf32, #tpu.memory_space<vmem>>, vector<1x64xf32>
    %c0_3 = arith.constant 0 : index
    %c0_4 = arith.constant 0 : index
    %3 = vector.load %arg2[%c0_3, %c0_4] : memref<32x64xbf16, #tpu.memory_space<vmem>>, vector<32x64xbf16>
    %cst = arith.constant dense<0.000000e+00> : vector<128x64xf32>
    %4 = tpu.matmul %1, %3, %cst {dimension_numbers = #tpu.dot_dimension_numbers<[1], [0], [0], [1], [0, 0, 1, 1], [], []>} : vector<128x32xbf16>, vector<32x64xbf16>, vector<128x64xf32> -> vector<128x64xf32>
    %5 = vector.broadcast %2 : vector<1x64xf32> to vector<128x64xf32>
    %6 = arith.addf %4, %5 : vector<128x64xf32>
    %cst_5 = arith.constant 5.000000e-01 : f32
    %7 = vector.broadcast %cst_5 : f32 to vector<128x64xf32>
    %8 = arith.mulf %7, %6 : vector<128x64xf32>
    %9 = math.tanh %8 : vector<128x64xf32>
    %cst_6 = arith.constant 1.000000e+00 : f32
    %10 = vector.broadcast %cst_6 : f32 to vector<128x64xf32>
    %11 = arith.addf %9, %10 : vector<128x64xf32>
    %cst_7 = arith.constant 5.000000e-01 : f32
    %12 = vector.broadcast %cst_7 : f32 to vector<128x64xf32>
    %13 = arith.mulf %12, %11 : vector<128x64xf32>
    %14 = arith.mulf %6, %13 : vector<128x64xf32>
    %15 = arith.truncf %14 : vector<128x64xf32> to vector<128x64xbf16>
    %c1 = arith.constant 1 : index
    %c0_8 = arith.constant 0 : index
    %16 = vector.load %arg5[%c1, %c0_8] : memref<5x128xf32, #tpu.memory_space<vmem>>, vector<1x64xf32>
    %c0_9 = arith.constant 0 : index
    %c0_10 = arith.constant 0 : index
    %17 = vector.load %arg3[%c0_9, %c0_10] : memref<64x64xbf16, #tpu.memory_space<vmem>>, vector<64x64xbf16>
    %cst_11 = arith.constant dense<0.000000e+00> : vector<128x64xf32>
    %18 = tpu.matmul %15, %17, %cst_11 {dimension_numbers = #tpu.dot_dimension_numbers<[1], [0], [0], [1], [0, 0, 1, 1], [], []>} : vector<128x64xbf16>, vector<64x64xbf16>, vector<128x64xf32> -> vector<128x64xf32>
    %19 = vector.broadcast %16 : vector<1x64xf32> to vector<128x64xf32>
    %20 = arith.addf %18, %19 : vector<128x64xf32>
    %cst_12 = arith.constant 5.000000e-01 : f32
    %21 = vector.broadcast %cst_12 : f32 to vector<128x64xf32>
    %22 = arith.mulf %21, %20 : vector<128x64xf32>
    %23 = math.tanh %22 : vector<128x64xf32>
    %cst_13 = arith.constant 1.000000e+00 : f32
    %24 = vector.broadcast %cst_13 : f32 to vector<128x64xf32>
    %25 = arith.addf %23, %24 : vector<128x64xf32>
    %cst_14 = arith.constant 5.000000e-01 : f32
    %26 = vector.broadcast %cst_14 : f32 to vector<128x64xf32>
    %27 = arith.mulf %26, %25 : vector<128x64xf32>
    %28 = arith.mulf %20, %27 : vector<128x64xf32>
    %29 = arith.truncf %28 : vector<128x64xf32> to vector<128x64xbf16>
    %c2 = arith.constant 2 : index
    %c0_15 = arith.constant 0 : index
    %30 = vector.load %arg5[%c2, %c0_15] : memref<5x128xf32, #tpu.memory_space<vmem>>, vector<1x128xf32>
    %c0_16 = arith.constant 0 : index
    %c0_17 = arith.constant 0 : index
    %31 = vector.load %arg4[%c0_16, %c0_17] : memref<64x128xbf16, #tpu.memory_space<vmem>>, vector<64x128xbf16>
    %cst_18 = arith.constant dense<0.000000e+00> : vector<128x128xf32>
    %32 = tpu.matmul %29, %31, %cst_18 {dimension_numbers = #tpu.dot_dimension_numbers<[1], [0], [0], [1], [0, 0, 1, 1], [], []>} : vector<128x64xbf16>, vector<64x128xbf16>, vector<128x128xf32> -> vector<128x128xf32>
    %33 = vector.broadcast %30 : vector<1x128xf32> to vector<128x128xf32>
    %34 = arith.addf %32, %33 : vector<128x128xf32>
    %c3 = arith.constant 3 : index
    %c0_19 = arith.constant 0 : index
    %35 = vector.load %arg5[%c3, %c0_19] : memref<5x128xf32, #tpu.memory_space<vmem>>, vector<1x128xf32>
    %c4 = arith.constant 4 : index
    %c0_20 = arith.constant 0 : index
    %36 = vector.load %arg5[%c4, %c0_20] : memref<5x128xf32, #tpu.memory_space<vmem>>, vector<1x128xf32>
    %cst_21 = arith.constant dense<0.000000e+00> : vector<128xf32>
    %37 = vector.multi_reduction <add>, %34, %cst_21 [1] : vector<128x128xf32> to vector<128xf32>
    %38 = vector.shape_cast %37 : vector<128xf32> to vector<128x1xf32>
    %cst_22 = arith.constant 3.125000e-02 : f32
    %39 = vector.broadcast %cst_22 : f32 to vector<128x1xf32>
    %40 = arith.mulf %38, %39 : vector<128x1xf32>
    %41 = arith.mulf %34, %34 : vector<128x128xf32>
    %cst_23 = arith.constant dense<0.000000e+00> : vector<128xf32>
    %42 = vector.multi_reduction <add>, %41, %cst_23 [1] : vector<128x128xf32> to vector<128xf32>
    %43 = vector.shape_cast %42 : vector<128xf32> to vector<128x1xf32>
    %cst_24 = arith.constant 3.125000e-02 : f32
    %44 = vector.broadcast %cst_24 : f32 to vector<128x1xf32>
    %45 = arith.mulf %43, %44 : vector<128x1xf32>
    %46 = arith.mulf %40, %40 : vector<128x1xf32>
    %47 = arith.subf %45, %46 : vector<128x1xf32>
    %48 = vector.broadcast %40 : vector<128x1xf32> to vector<128x128xf32>
    %49 = arith.subf %34, %48 : vector<128x128xf32>
    %cst_25 = arith.constant 9.99999974E-6 : f32
    %50 = vector.broadcast %cst_25 : f32 to vector<128x1xf32>
    %51 = arith.addf %47, %50 : vector<128x1xf32>
    %52 = math.rsqrt %51 : vector<128x1xf32>
    %53 = vector.broadcast %52 : vector<128x1xf32> to vector<128x128xf32>
    %54 = arith.mulf %49, %53 : vector<128x128xf32>
    %55 = vector.broadcast %35 : vector<1x128xf32> to vector<128x128xf32>
    %56 = arith.mulf %54, %55 : vector<128x128xf32>
    %57 = vector.broadcast %36 : vector<1x128xf32> to vector<128x128xf32>
    %58 = arith.addf %56, %57 : vector<128x128xf32>
    %c0_26 = arith.constant 0 : index
    %c0_27 = arith.constant 0 : index
    %59 = vector.load %arg6[%c0_26, %c0_27] : memref<128x128xf32, #tpu.memory_space<vmem>>, vector<128x128xf32>
    tpu.vector_store %arg6[%c0_26, %c0_27], %58 {strides = array<i32>} : memref<128x128xf32, #tpu.memory_space<vmem>>, vector<128x128xf32>,
    return
  }
  func.func @transform_0(%arg0: i32) -> (i32, i32) {
    %c0_i32 = arith.constant 0 : i32
    %c0_i32_0 = arith.constant 0 : i32
    return %arg0, %c0_i32 : i32, i32
  }
  func.func @transform_1(%arg0: i32) -> (i32, i32) {
    %c0_i32 = arith.constant 0 : i32
    %c0_i32_0 = arith.constant 0 : i32
    %c0_i32_1 = arith.constant 0 : i32
    return %c0_i32, %c0_i32_0 : i32, i32
  }
  func.func @transform_2(%arg0: i32) -> (i32, i32) {
    %c0_i32 = arith.constant 0 : i32
    %c0_i32_0 = arith.constant 0 : i32
    %c0_i32_1 = arith.constant 0 : i32
    return %c0_i32, %c0_i32_0 : i32, i32
  }
  func.func @transform_3(%arg0: i32) -> (i32, i32) {
    %c0_i32 = arith.constant 0 : i32
    %c0_i32_0 = arith.constant 0 : i32
    %c0_i32_1 = arith.constant 0 : i32
    return %c0_i32, %c0_i32_0 : i32, i32
  }
  func.func @transform_4(%arg0: i32) -> (i32, i32) {
    %c0_i32 = arith.constant 0 : i32
    %c0_i32_0 = arith.constant 0 : i32
    %c0_i32_1 = arith.constant 0 : i32
    return %c0_i32, %c0_i32_0 : i32, i32
  }
  func.func @transform_5(%arg0: i32) -> (i32, i32) {
    %c0_i32 = arith.constant 0 : i32
    %c0_i32_0 = arith.constant 0 : i32
    return %arg0, %c0_i32 : i32, i32
  }
}

</mosaic_0001>

<llo_original>
// kernel: mlp_forward.1
$region0: #{mlp_forward.1}
  #allocation0 [shape = 'u32[]', space=smem, size = 0x4, offset = 0x4, fixed_abs, tag = 'smem constant byte address 0x4 - core index']
  #allocation1 [shape = 'u32[72,128]{1,0:T(1,128)}', space=vmem, size = 0x9000, scoped, tag = 'internal scratch']
  %s0 = inlined_call_operand.vmem [shape: f32[128,32], index: 0, kind: input, shape index: {}]
  %s1 = inlined_call_operand.vmem [shape: bf16[32,64], index: 1, kind: input, shape index: {}]
  %s2 = inlined_call_operand.vmem [shape: bf16[64,64], index: 2, kind: input, shape index: {}]
  %s3 = inlined_call_operand.vmem [shape: bf16[64,128], index: 3, kind: input, shape index: {}]
  %s4 = inlined_call_operand.vmem [shape: f32[5,128], index: 4, kind: input, shape index: {}]
  %s5 = inlined_call_operand.vmem [shape: f32[128,128], index: 5, kind: output, shape index: {}]
  %s6 = sld [smem:[#allocation0]]
  $region30: #{mlp_forward.1} parent=0
    _
  %s8 = ssub.s32 1, %s6
  %s9 = scalar_select 0, %s8, %s6
  // Predicated region
  $region2: #{mlp_forward.1} parent=0 // pred_check
    _
  $region3: #{mlp_forward.1} parent=0 // pred_check_branch
    %11 = sbr.rel (0) target = $region5
  $region4: #{mlp_forward.1} parent=0 // pred_region
    _
  $region5: #{mlp_forward.1} parent=0 // pred_fallthru
    _
  // Predicated region
  $region6: #{mlp_forward.1} parent=0 // pred_check
    _
  $region7: #{mlp_forward.1} parent=0 // pred_check_branch
    %13 = sbr.rel (0) target = $region9
  $region8: #{mlp_forward.1} parent=0 // pred_region
    _
  $region9: #{mlp_forward.1} parent=0 // pred_fallthru
    _
  // Predicated region
  $region10: #{mlp_forward.1} parent=0 // pred_check
    _
  $region11: #{mlp_forward.1} parent=0 // pred_check_branch
    %15 = sbr.rel (0) target = $region13
  $region12: #{mlp_forward.1} parent=0 // pred_region
    _
  $region13: #{mlp_forward.1} parent=0 // pred_fallthru
    _
  // Predicated region
  $region14: #{mlp_forward.1} parent=0 // pred_check
    _
  $region15: #{mlp_forward.1} parent=0 // pred_check_branch
    %17 = sbr.rel (0) target = $region17
  $region16: #{mlp_forward.1} parent=0 // pred_region
    _
  $region17: #{mlp_forward.1} parent=0 // pred_fallthru
    _
  // Predicated region
  $region18: #{mlp_forward.1} parent=0 // pred_check
    _
  $region19: #{mlp_forward.1} parent=0 // pred_check_branch
    %19 = sbr.rel (0) target = $region21
  $region20: #{mlp_forward.1} parent=0 // pred_region
    _
  $region21: #{mlp_forward.1} parent=0 // pred_fallthru
    _
  %v21 = vld [vmem:[%s0] sm:$0xff]
  %v22 = vld [vmem:[%s0 + $0x8] sm:$0xff]
  %v23 = vld [vmem:[%s0 + $0x10] sm:$0xff]
  %v24 = vld [vmem:[%s0 + $0x18] sm:$0xff]
  %v25 = vld [vmem:[%s0 + $0x20] sm:$0xff]
  %v26 = vld [vmem:[%s0 + $0x28] sm:$0xff]
  %v27 = vld [vmem:[%s0 + $0x30] sm:$0xff]
  %v28 = vld [vmem:[%s0 + $0x38] sm:$0xff]
  %v29 = vld [vmem:[%s0 + $0x40] sm:$0xff]
  %v30 = vld [vmem:[%s0 + $0x48] sm:$0xff]
  %v31 = vld [vmem:[%s0 + $0x50] sm:$0xff]
  %v32 = vld [vmem:[%s0 + $0x58] sm:$0xff]
  %v33 = vld [vmem:[%s0 + $0x60] sm:$0xff]
  %v34 = vld [vmem:[%s0 + $0x68] sm:$0xff]
  %v35 = vld [vmem:[%s0 + $0x70] sm:$0xff]
  %v36 = vld [vmem:[%s0 + $0x78] sm:$0xff]
  %v37 = vpack.c.bf16 %v22, %v21
  %v38 = vpack.c.bf16 %v24, %v23
  %v39 = vpack.c.bf16 %v26, %v25
  %v40 = vpack.c.bf16 %v28, %v27
  %v41 = vpack.c.bf16 %v30, %v29
  %v42 = vpack.c.bf16 %v32, %v31
  %v43 = vpack.c.bf16 %v34, %v33
  %v44 = vpack.c.bf16 %v36, %v35
  %v45 = vld [vmem:[%s4] sm:$0x1]
  %v46 = vld [vmem:[%s1] sm:$0xf]
  %v47 = vld [vmem:[%s1 + $0x4] sm:$0xf]
  %v48 = vld [vmem:[%s1 + $0x8] sm:$0xf]
  %v49 = vld [vmem:[%s1 + $0xc] sm:$0xf]
  %v50 = vperm.slane %v45, 0
  %v55 = vunpack.c.l.b16 %v46
  %v56 = vunpack.c.l.b16 %v47
  %v57 = vunpack.c.l.b16 %v48
  %v58 = vunpack.c.l.b16 %v49
  %v59 = vpack.c.b16 %v56, %v55
  %v60 = vpack.c.b16 %v58, %v57
  %vm63 = vcmask 261120
  %v65 = vsel %vm63, %v37, 0
  %v68 = vsel %vm63, %v38, 0
  %v71 = vsel %vm63, %v39, 0
  %v74 = vsel %vm63, %v40, 0
  %v77 = vsel %vm63, %v41, 0
  %v80 = vsel %vm63, %v42, 0
  %v83 = vsel %vm63, %v43, 0
  %v86 = vsel %vm63, %v44, 0
  %88 = vmatpush.bf16.msra.mxu0 0
  %89 = vmatpush.bf16.msra.mxu0 0
  %90 = vmatpush.bf16.msra.mxu0 0
  %91 = vmatpush.bf16.msra.mxu0 0
  %92 = vmatpush.bf16.msra.mxu0 0
  %93 = vmatpush.bf16.msra.mxu0 0
  %94 = vmatpush.bf16.msra.mxu0 %v60
  %95 = vmatpush.bf16.msra.mxu0 %v59
  %96 = vmatmul.bf16.gmra.mxu0 %v65
  %v97 = vpop.f32.mrf.mxu0
  %v98 = vadd.f32 %v50, %v97
  %v99 = vpop.f32.mrf.mxu0
  %v100 = vadd.f32 %v50, %v99
  %101 = vmatmul.bf16.gmra.mxu0 %v68
  %v102 = vpop.f32.mrf.mxu0
  %v103 = vadd.f32 %v50, %v102
  %v104 = vpop.f32.mrf.mxu0
  %v105 = vadd.f32 %v50, %v104
  %106 = vmatmul.bf16.gmra.mxu0 %v71
  %v107 = vpop.f32.mrf.mxu0
  %v108 = vadd.f32 %v50, %v107
  %v109 = vpop.f32.mrf.mxu0
  %v110 = vadd.f32 %v50, %v109
  %111 = vmatmul.bf16.gmra.mxu0 %v74
  %v112 = vpop.f32.mrf.mxu0
  %v113 = vadd.f32 %v50, %v112
  %v114 = vpop.f32.mrf.mxu0
  %v115 = vadd.f32 %v50, %v114
  %116 = vmatmul.bf16.gmra.mxu0 %v77
  %v117 = vpop.f32.mrf.mxu0
  %v118 = vadd.f32 %v50, %v117
  %v119 = vpop.f32.mrf.mxu0
  %v120 = vadd.f32 %v50, %v119
  %121 = vmatmul.bf16.gmra.mxu0 %v80
  %v122 = vpop.f32.mrf.mxu0
  %v123 = vadd.f32 %v50, %v122
  %v124 = vpop.f32.mrf.mxu0
  %v125 = vadd.f32 %v50, %v124
  %126 = vmatmul.bf16.gmra.mxu0 %v83
  %v127 = vpop.f32.mrf.mxu0
  %v128 = vadd.f32 %v50, %v127
  %v129 = vpop.f32.mrf.mxu0
  %v130 = vadd.f32 %v50, %v129
  %131 = vmatmul.bf16.gmra.mxu0 %v86
  %v132 = vpop.f32.mrf.mxu0
  %v133 = vadd.f32 %v50, %v132
  %v134 = vpop.f32.mrf.mxu0
  %v135 = vadd.f32 %v50, %v134
  %136 = vdwg.mxu0
  %v137 = vmul.f32 %v98, 0.5
  %v138 = vmul.f32 %v100, 0.5
  %v139 = vmul.f32 %v103, 0.5
  %v140 = vmul.f32 %v105, 0.5
  %v141 = vmul.f32 %v108, 0.5
  %v142 = vmul.f32 %v110, 0.5
  %v143 = vmul.f32 %v113, 0.5
  %v144 = vmul.f32 %v115, 0.5
  %v145 = vmul.f32 %v118, 0.5
  %v146 = vmul.f32 %v120, 0.5
  %v147 = vmul.f32 %v123, 0.5
  %v148 = vmul.f32 %v125, 0.5
  %v149 = vmul.f32 %v128, 0.5
  %v150 = vmul.f32 %v130, 0.5
  %v151 = vmul.f32 %v133, 0.5
  %v152 = vmul.f32 %v135, 0.5
  %v153 = vtanh.pop %v137
  %v154 = vtanh.pop %v138
  %v155 = vtanh.pop %v139
  %v156 = vtanh.pop %v140
  %v157 = vtanh.pop %v141
  %v158 = vtanh.pop %v142
  %v159 = vtanh.pop %v143
  %v160 = vtanh.pop %v144
  %v161 = vtanh.pop %v145
  %v162 = vtanh.pop %v146
  %v163 = vtanh.pop %v147
  %v164 = vtanh.pop %v148
  %v165 = vtanh.pop %v149
  %v166 = vtanh.pop %v150
  %v167 = vtanh.pop %v151
  %v168 = vtanh.pop %v152
  %v169 = vadd.f32 %v153, 1.0
  %v170 = vadd.f32 %v154, 1.0
  %v171 = vadd.f32 %v155, 1.0
  %v172 = vadd.f32 %v156, 1.0
  %v173 = vadd.f32 %v157, 1.0
  %v174 = vadd.f32 %v158, 1.0
  %v175 = vadd.f32 %v159, 1.0
  %v176 = vadd.f32 %v160, 1.0
  %v177 = vadd.f32 %v161, 1.0
  %v178 = vadd.f32 %v162, 1.0
  %v179 = vadd.f32 %v163, 1.0
  %v180 = vadd.f32 %v164, 1.0
  %v181 = vadd.f32 %v165, 1.0
  %v182 = vadd.f32 %v166, 1.0
  %v183 = vadd.f32 %v167, 1.0
  %v184 = vadd.f32 %v168, 1.0
  %v185 = vmul.f32 %v169, 0.5
  %v186 = vmul.f32 %v170, 0.5
  %v187 = vmul.f32 %v171, 0.5
  %v188 = vmul.f32 %v172, 0.5
  %v189 = vmul.f32 %v173, 0.5
  %v190 = vmul.f32 %v174, 0.5
  %v191 = vmul.f32 %v175, 0.5
  %v192 = vmul.f32 %v176, 0.5
  %v193 = vmul.f32 %v177, 0.5
  %v194 = vmul.f32 %v178, 0.5
  %v195 = vmul.f32 %v179, 0.5
  %v196 = vmul.f32 %v180, 0.5
  %v197 = vmul.f32 %v181, 0.5
  %v198 = vmul.f32 %v182, 0.5
  %v199 = vmul.f32 %v183, 0.5
  %v200 = vmul.f32 %v184, 0.5
  %v201 = vmul.f32 %v98, %v185
  %v202 = vmul.f32 %v100, %v186
  %v203 = vmul.f32 %v103, %v187
  %v204 = vmul.f32 %v105, %v188
  %v205 = vmul.f32 %v108, %v189
  %v206 = vmul.f32 %v110, %v190
  %v207 = vmul.f32 %v113, %v191
  %v208 = vmul.f32 %v115, %v192
  %v209 = vmul.f32 %v118, %v193
  %v210 = vmul.f32 %v120, %v194
  %v211 = vmul.f32 %v123, %v195
  %v212 = vmul.f32 %v125, %v196
  %v213 = vmul.f32 %v128, %v197
  %v214 = vmul.f32 %v130, %v198
  %v215 = vmul.f32 %v133, %v199
  %v216 = vmul.f32 %v135, %v200
  %v217 = vpack.c.bf16 %v202, %v201
  %v218 = vpack.c.bf16 %v204, %v203
  %v219 = vpack.c.bf16 %v206, %v205
  %v220 = vpack.c.bf16 %v208, %v207
  %v221 = vpack.c.bf16 %v210, %v209
  %v222 = vpack.c.bf16 %v212, %v211
  %v223 = vpack.c.bf16 %v214, %v213
  %v224 = vpack.c.bf16 %v216, %v215
  %v225 = vld [vmem:[%s4 + $0x1] sm:$0x1]
  %v226 = vld [vmem:[%s2] sm:$0xf]
  %v227 = vld [vmem:[%s2 + $0x4] sm:$0xf]
  %v228 = vld [vmem:[%s2 + $0x8] sm:$0xf]
  %v229 = vld [vmem:[%s2 + $0xc] sm:$0xf]
  %v230 = vld [vmem:[%s2 + $0x10] sm:$0xf]
  %v231 = vld [vmem:[%s2 + $0x14] sm:$0xf]
  %v232 = vld [vmem:[%s2 + $0x18] sm:$0xf]
  %v233 = vld [vmem:[%s2 + $0x1c] sm:$0xf]
  %v234 = vperm.slane %v225, 0
  %v243 = vunpack.c.l.b16 %v226
  %v244 = vunpack.c.l.b16 %v227
  %v245 = vunpack.c.l.b16 %v228
  %v246 = vunpack.c.l.b16 %v229
  %v247 = vunpack.c.l.b16 %v230
  %v248 = vunpack.c.l.b16 %v231
  %v249 = vunpack.c.l.b16 %v232
  %v250 = vunpack.c.l.b16 %v233
  %v251 = vpack.c.b16 %v244, %v243
  %v252 = vpack.c.b16 %v246, %v245
  %v253 = vpack.c.b16 %v248, %v247
  %v254 = vpack.c.b16 %v250, %v249
  %vm259 = vcmask 523264
  %v261 = vsel %vm259, %v217, 0
  %v264 = vsel %vm259, %v218, 0
  %v267 = vsel %vm259, %v219, 0
  %v270 = vsel %vm259, %v220, 0
  %v273 = vsel %vm259, %v221, 0
  %v276 = vsel %vm259, %v222, 0
  %v279 = vsel %vm259, %v223, 0
  %v282 = vsel %vm259, %v224, 0
  %284 = vmatpush.bf16.msra.mxu0 0
  %285 = vmatpush.bf16.msra.mxu0 0
  %286 = vmatpush.bf16.msra.mxu0 0
  %287 = vmatpush.bf16.msra.mxu0 0
  %288 = vmatpush.bf16.msra.mxu0 %v254
  %289 = vmatpush.bf16.msra.mxu0 %v253
  %290 = vmatpush.bf16.msra.mxu0 %v252
  %291 = vmatpush.bf16.msra.mxu0 %v251
  %292 = vmatmul.bf16.gmra.mxu0 %v261
  %v293 = vpop.f32.mrf.mxu0
  %v294 = vadd.f32 %v234, %v293
  %v295 = vpop.f32.mrf.mxu0
  %v296 = vadd.f32 %v234, %v295
  %297 = vmatmul.bf16.gmra.mxu0 %v264
  %v298 = vpop.f32.mrf.mxu0
  %v299 = vadd.f32 %v234, %v298
  %v300 = vpop.f32.mrf.mxu0
  %v301 = vadd.f32 %v234, %v300
  %302 = vmatmul.bf16.gmra.mxu0 %v267
  %v303 = vpop.f32.mrf.mxu0
  %v304 = vadd.f32 %v234, %v303
  %v305 = vpop.f32.mrf.mxu0
  %v306 = vadd.f32 %v234, %v305
  %307 = vmatmul.bf16.gmra.mxu0 %v270
  %v308 = vpop.f32.mrf.mxu0
  %v309 = vadd.f32 %v234, %v308
  %v310 = vpop.f32.mrf.mxu0
  %v311 = vadd.f32 %v234, %v310
  %312 = vmatmul.bf16.gmra.mxu0 %v273
  %v313 = vpop.f32.mrf.mxu0
  %v314 = vadd.f32 %v234, %v313
  %v315 = vpop.f32.mrf.mxu0
  %v316 = vadd.f32 %v234, %v315
  %317 = vmatmul.bf16.gmra.mxu0 %v276
  %v318 = vpop.f32.mrf.mxu0
  %v319 = vadd.f32 %v234, %v318
  %v320 = vpop.f32.mrf.mxu0
  %v321 = vadd.f32 %v234, %v320
  %322 = vmatmul.bf16.gmra.mxu0 %v279
  %v323 = vpop.f32.mrf.mxu0
  %v324 = vadd.f32 %v234, %v323
  %v325 = vpop.f32.mrf.mxu0
  %v326 = vadd.f32 %v234, %v325
  %327 = vmatmul.bf16.gmra.mxu0 %v282
  %v328 = vpop.f32.mrf.mxu0
  %v329 = vadd.f32 %v234, %v328
  %v330 = vpop.f32.mrf.mxu0
  %v331 = vadd.f32 %v234, %v330
  %332 = vdwg.mxu0
  %v333 = vmul.f32 %v294, 0.5
  %v334 = vmul.f32 %v296, 0.5
  %v335 = vmul.f32 %v299, 0.5
  %v336 = vmul.f32 %v301, 0.5
  %v337 = vmul.f32 %v304, 0.5
  %v338 = vmul.f32 %v306, 0.5
  %v339 = vmul.f32 %v309, 0.5
  %v340 = vmul.f32 %v311, 0.5
  %v341 = vmul.f32 %v314, 0.5
  %v342 = vmul.f32 %v316, 0.5
  %v343 = vmul.f32 %v319, 0.5
  %v344 = vmul.f32 %v321, 0.5
  %v345 = vmul.f32 %v324, 0.5
  %v346 = vmul.f32 %v326, 0.5
  %v347 = vmul.f32 %v329, 0.5
  %v348 = vmul.f32 %v331, 0.5
  %v349 = vtanh.pop %v333
  %v350 = vtanh.pop %v334
  %v351 = vtanh.pop %v335
  %v352 = vtanh.pop %v336
  %v353 = vtanh.pop %v337
  %v354 = vtanh.pop %v338
  %v355 = vtanh.pop %v339
  %v356 = vtanh.pop %v340
  %v357 = vtanh.pop %v341
  %v358 = vtanh.pop %v342
  %v359 = vtanh.pop %v343
  %v360 = vtanh.pop %v344
  %v361 = vtanh.pop %v345
  %v362 = vtanh.pop %v346
  %v363 = vtanh.pop %v347
  %v364 = vtanh.pop %v348
  %v365 = vadd.f32 %v349, 1.0
  %v366 = vadd.f32 %v350, 1.0
  %v367 = vadd.f32 %v351, 1.0
  %v368 = vadd.f32 %v352, 1.0
  %v369 = vadd.f32 %v353, 1.0
  %v370 = vadd.f32 %v354, 1.0
  %v371 = vadd.f32 %v355, 1.0
  %v372 = vadd.f32 %v356, 1.0
  %v373 = vadd.f32 %v357, 1.0
  %v374 = vadd.f32 %v358, 1.0
  %v375 = vadd.f32 %v359, 1.0
  %v376 = vadd.f32 %v360, 1.0
  %v377 = vadd.f32 %v361, 1.0
  %v378 = vadd.f32 %v362, 1.0
  %v379 = vadd.f32 %v363, 1.0
  %v380 = vadd.f32 %v364, 1.0
  %v381 = vmul.f32 %v365, 0.5
  %v382 = vmul.f32 %v366, 0.5
  %v383 = vmul.f32 %v367, 0.5
  %v384 = vmul.f32 %v368, 0.5
  %v385 = vmul.f32 %v369, 0.5
  %v386 = vmul.f32 %v370, 0.5
  %v387 = vmul.f32 %v371, 0.5
  %v388 = vmul.f32 %v372, 0.5
  %v389 = vmul.f32 %v373, 0.5
  %v390 = vmul.f32 %v374, 0.5
  %v391 = vmul.f32 %v375, 0.5
  %v392 = vmul.f32 %v376, 0.5
  %v393 = vmul.f32 %v377, 0.5
  %v394 = vmul.f32 %v378, 0.5
  %v395 = vmul.f32 %v379, 0.5
  %v396 = vmul.f32 %v380, 0.5
  %v397 = vmul.f32 %v294, %v381
  %v398 = vmul.f32 %v296, %v382
  %v399 = vmul.f32 %v299, %v383
  %v400 = vmul.f32 %v301, %v384
  %v401 = vmul.f32 %v304, %v385
  %v402 = vmul.f32 %v306, %v386
  %v403 = vmul.f32 %v309, %v387
  %v404 = vmul.f32 %v311, %v388
  %v405 = vmul.f32 %v314, %v389
  %v406 = vmul.f32 %v316, %v390
  %v407 = vmul.f32 %v319, %v391
  %v408 = vmul.f32 %v321, %v392
  %v409 = vmul.f32 %v324, %v393
  %v410 = vmul.f32 %v326, %v394
  %v411 = vmul.f32 %v329, %v395
  %v412 = vmul.f32 %v331, %v396
  %v413 = vpack.c.bf16 %v398, %v397
  %v414 = vpack.c.bf16 %v400, %v399
  %v415 = vpack.c.bf16 %v402, %v401
  %v416 = vpack.c.bf16 %v404, %v403
  %v417 = vpack.c.bf16 %v406, %v405
  %v418 = vpack.c.bf16 %v408, %v407
  %v419 = vpack.c.bf16 %v410, %v409
  %v420 = vpack.c.bf16 %v412, %v411
  %v421 = vld [vmem:[%s4 + $0x2] sm:$0x1]
  %v422 = vld [vmem:[%s3] sm:$0xf]
  %v423 = vld [vmem:[%s3 + $0x4] sm:$0xf]
  %v424 = vld [vmem:[%s3 + $0x8] sm:$0xf]
  %v425 = vld [vmem:[%s3 + $0xc] sm:$0xf]
  %v426 = vld [vmem:[%s3 + $0x10] sm:$0xf]
  %v427 = vld [vmem:[%s3 + $0x14] sm:$0xf]
  %v428 = vld [vmem:[%s3 + $0x18] sm:$0xf]
  %v429 = vld [vmem:[%s3 + $0x1c] sm:$0xf]
  %v430 = vperm.slane %v421, 0
  %v439 = vunpack.c.l.b16 %v422
  %v440 = vunpack.c.l.b16 %v423
  %v441 = vunpack.c.l.b16 %v424
  %v442 = vunpack.c.l.b16 %v425
  %v443 = vunpack.c.l.b16 %v426
  %v444 = vunpack.c.l.b16 %v427
  %v445 = vunpack.c.l.b16 %v428
  %v446 = vunpack.c.l.b16 %v429
  %v447 = vpack.c.b16 %v440, %v439
  %v448 = vpack.c.b16 %v442, %v441
  %v449 = vpack.c.b16 %v444, %v443
  %v450 = vpack.c.b16 %v446, %v445
  %v456 = vsel %vm259, %v413, 0
  %v459 = vsel %vm259, %v414, 0
  %v462 = vsel %vm259, %v415, 0
  %v465 = vsel %vm259, %v416, 0
  %v468 = vsel %vm259, %v417, 0
  %v471 = vsel %vm259, %v418, 0
  %v474 = vsel %vm259, %v419, 0
  %v477 = vsel %vm259, %v420, 0
  %479 = vmatpush.bf16.msra.mxu0 0
  %480 = vmatpush.bf16.msra.mxu0 0
  %481 = vmatpush.bf16.msra.mxu0 0
  %482 = vmatpush.bf16.msra.mxu0 0
  %483 = vmatpush.bf16.msra.mxu0 %v450
  %484 = vmatpush.bf16.msra.mxu0 %v449
  %485 = vmatpush.bf16.msra.mxu0 %v448
  %486 = vmatpush.bf16.msra.mxu0 %v447
  %487 = vmatmul.bf16.gmra.mxu0 %v456
  %v488 = vpop.f32.mrf.mxu0
  %v489 = vadd.f32 %v430, %v488
  %v490 = vpop.f32.mrf.mxu0
  %v491 = vadd.f32 %v430, %v490
  %492 = vmatmul.bf16.gmra.mxu0 %v459
  %v493 = vpop.f32.mrf.mxu0
  %v494 = vadd.f32 %v430, %v493
  %v495 = vpop.f32.mrf.mxu0
  %v496 = vadd.f32 %v430, %v495
  %497 = vmatmul.bf16.gmra.mxu0 %v462
  %v498 = vpop.f32.mrf.mxu0
  %v499 = vadd.f32 %v430, %v498
  %v500 = vpop.f32.mrf.mxu0
  %v501 = vadd.f32 %v430, %v500
  %502 = vmatmul.bf16.gmra.mxu0 %v465
  %v503 = vpop.f32.mrf.mxu0
  %v504 = vadd.f32 %v430, %v503
  %v505 = vpop.f32.mrf.mxu0
  %v506 = vadd.f32 %v430, %v505
  %507 = vmatmul.bf16.gmra.mxu0 %v468
  %v508 = vpop.f32.mrf.mxu0
  %v509 = vadd.f32 %v430, %v508
  %v510 = vpop.f32.mrf.mxu0
  %v511 = vadd.f32 %v430, %v510
  %512 = vmatmul.bf16.gmra.mxu0 %v471
  %v513 = vpop.f32.mrf.mxu0
  %v514 = vadd.f32 %v430, %v513
  %v515 = vpop.f32.mrf.mxu0
  %v516 = vadd.f32 %v430, %v515
  %517 = vmatmul.bf16.gmra.mxu0 %v474
  %v518 = vpop.f32.mrf.mxu0
  %v519 = vadd.f32 %v430, %v518
  %v520 = vpop.f32.mrf.mxu0
  %v521 = vadd.f32 %v430, %v520
  %522 = vmatmul.bf16.gmra.mxu0 %v477
  %v523 = vpop.f32.mrf.mxu0
  %v524 = vadd.f32 %v430, %v523
  %v525 = vpop.f32.mrf.mxu0
  %v526 = vadd.f32 %v430, %v525
  %527 = vdwg.mxu0
  %v528 = vld [vmem:[%s4 + $0x3] sm:$0x1]
  %v529 = vld [vmem:[%s4 + $0x4] sm:$0x1]
  %530 = vadd.xlane.f32.xlu0 %v489
  %v531 = vpop.xlane.xlu0 %530
  %532 = vadd.xlane.f32.xlu0 %v491
  %v533 = vpop.xlane.xlu0 %532
  %534 = vadd.xlane.f32.xlu0 %v494
  %v535 = vpop.xlane.xlu0 %534
  %536 = vadd.xlane.f32.xlu0 %v496
  %v537 = vpop.xlane.xlu0 %536
  %538 = vadd.xlane.f32.xlu0 %v499
  %v539 = vpop.xlane.xlu0 %538
  %540 = vadd.xlane.f32.xlu0 %v501
  %v541 = vpop.xlane.xlu0 %540
  %542 = vadd.xlane.f32.xlu0 %v504
  %v543 = vpop.xlane.xlu0 %542
  %544 = vadd.xlane.f32.xlu0 %v506
  %v545 = vpop.xlane.xlu0 %544
  %546 = vadd.xlane.f32.xlu0 %v509
  %v547 = vpop.xlane.xlu0 %546
  %548 = vadd.xlane.f32.xlu0 %v511
  %v549 = vpop.xlane.xlu0 %548
  %550 = vadd.xlane.f32.xlu0 %v514
  %v551 = vpop.xlane.xlu0 %550
  %552 = vadd.xlane.f32.xlu0 %v516
  %v553 = vpop.xlane.xlu0 %552
  %554 = vadd.xlane.f32.xlu0 %v519
  %v555 = vpop.xlane.xlu0 %554
  %556 = vadd.xlane.f32.xlu0 %v521
  %v557 = vpop.xlane.xlu0 %556
  %558 = vadd.xlane.f32.xlu0 %v524
  %v559 = vpop.xlane.xlu0 %558
  %560 = vadd.xlane.f32.xlu0 %v526
  %v561 = vpop.xlane.xlu0 %560
  %v562 = vmul.f32 %v531, 0.03125
  %v563 = vmul.f32 %v533, 0.03125
  %v564 = vmul.f32 %v535, 0.03125
  %v565 = vmul.f32 %v537, 0.03125
  %v566 = vmul.f32 %v539, 0.03125
  %v567 = vmul.f32 %v541, 0.03125
  %v568 = vmul.f32 %v543, 0.03125
  %v569 = vmul.f32 %v545, 0.03125
  %v570 = vmul.f32 %v547, 0.03125
  %v571 = vmul.f32 %v549, 0.03125
  %v572 = vmul.f32 %v551, 0.03125
  %v573 = vmul.f32 %v553, 0.03125
  %v574 = vmul.f32 %v555, 0.03125
  %v575 = vmul.f32 %v557, 0.03125
  %v576 = vmul.f32 %v559, 0.03125
  %v577 = vmul.f32 %v561, 0.03125
  %v578 = vmul.f32 %v489, %v489
  %v579 = vmul.f32 %v491, %v491
  %v580 = vmul.f32 %v494, %v494
  %v581 = vmul.f32 %v496, %v496
  %v582 = vmul.f32 %v499, %v499
  %v583 = vmul.f32 %v501, %v501
  %v584 = vmul.f32 %v504, %v504
  %v585 = vmul.f32 %v506, %v506
  %v586 = vmul.f32 %v509, %v509
  %v587 = vmul.f32 %v511, %v511
  %v588 = vmul.f32 %v514, %v514
  %v589 = vmul.f32 %v516, %v516
  %v590 = vmul.f32 %v519, %v519
  %v591 = vmul.f32 %v521, %v521
  %v592 = vmul.f32 %v524, %v524
  %v593 = vmul.f32 %v526, %v526
  %594 = vadd.xlane.f32.xlu0 %v578
  %v595 = vpop.xlane.xlu0 %594
  %596 = vadd.xlane.f32.xlu0 %v579
  %v597 = vpop.xlane.xlu0 %596
  %598 = vadd.xlane.f32.xlu0 %v580
  %v599 = vpop.xlane.xlu0 %598
  %600 = vadd.xlane.f32.xlu0 %v581
  %v601 = vpop.xlane.xlu0 %600
  %602 = vadd.xlane.f32.xlu0 %v582
  %v603 = vpop.xlane.xlu0 %602
  %604 = vadd.xlane.f32.xlu0 %v583
  %v605 = vpop.xlane.xlu0 %604
  %606 = vadd.xlane.f32.xlu0 %v584
  %v607 = vpop.xlane.xlu0 %606
  %608 = vadd.xlane.f32.xlu0 %v585
  %v609 = vpop.xlane.xlu0 %608
  %610 = vadd.xlane.f32.xlu0 %v586
  %v611 = vpop.xlane.xlu0 %610
  %612 = vadd.xlane.f32.xlu0 %v587
  %v613 = vpop.xlane.xlu0 %612
  %614 = vadd.xlane.f32.xlu0 %v588
  %v615 = vpop.xlane.xlu0 %614
  %616 = vadd.xlane.f32.xlu0 %v589
  %v617 = vpop.xlane.xlu0 %616
  %618 = vadd.xlane.f32.xlu0 %v590
  %v619 = vpop.xlane.xlu0 %618
  %620 = vadd.xlane.f32.xlu0 %v591
  %v621 = vpop.xlane.xlu0 %620
  %622 = vadd.xlane.f32.xlu0 %v592
  %v623 = vpop.xlane.xlu0 %622
  %624 = vadd.xlane.f32.xlu0 %v593
  %v625 = vpop.xlane.xlu0 %624
  %v626 = vmul.f32 %v595, 0.03125
  %v627 = vmul.f32 %v597, 0.03125
  %v628 = vmul.f32 %v599, 0.03125
  %v629 = vmul.f32 %v601, 0.03125
  %v630 = vmul.f32 %v603, 0.03125
  %v631 = vmul.f32 %v605, 0.03125
  %v632 = vmul.f32 %v607, 0.03125
  %v633 = vmul.f32 %v609, 0.03125
  %v634 = vmul.f32 %v611, 0.03125
  %v635 = vmul.f32 %v613, 0.03125
  %v636 = vmul.f32 %v615, 0.03125
  %v637 = vmul.f32 %v617, 0.03125
  %v638 = vmul.f32 %v619, 0.03125
  %v639 = vmul.f32 %v621, 0.03125
  %v640 = vmul.f32 %v623, 0.03125
  %v641 = vmul.f32 %v625, 0.03125
  %v642 = vmul.f32 %v562, %v562
  %v643 = vmul.f32 %v563, %v563
  %v644 = vmul.f32 %v564, %v564
  %v645 = vmul.f32 %v565, %v565
  %v646 = vmul.f32 %v566, %v566
  %v647 = vmul.f32 %v567, %v567
  %v648 = vmul.f32 %v568, %v568
  %v649 = vmul.f32 %v569, %v569
  %v650 = vmul.f32 %v570, %v570
  %v651 = vmul.f32 %v571, %v571
  %v652 = vmul.f32 %v572, %v572
  %v653 = vmul.f32 %v573, %v573
  %v654 = vmul.f32 %v574, %v574
  %v655 = vmul.f32 %v575, %v575
  %v656 = vmul.f32 %v576, %v576
  %v657 = vmul.f32 %v577, %v577
  %v658 = vsub.f32 %v626, %v642
  %v659 = vsub.f32 %v627, %v643
  %v660 = vsub.f32 %v628, %v644
  %v661 = vsub.f32 %v629, %v645
  %v662 = vsub.f32 %v630, %v646
  %v663 = vsub.f32 %v631, %v647
  %v664 = vsub.f32 %v632, %v648
  %v665 = vsub.f32 %v633, %v649
  %v666 = vsub.f32 %v634, %v650
  %v667 = vsub.f32 %v635, %v651
  %v668 = vsub.f32 %v636, %v652
  %v669 = vsub.f32 %v637, %v653
  %v670 = vsub.f32 %v638, %v654
  %v671 = vsub.f32 %v639, %v655
  %v672 = vsub.f32 %v640, %v656
  %v673 = vsub.f32 %v641, %v657
  %v674 = vsub.f32 %v489, %v562
  %v675 = vsub.f32 %v491, %v563
  %v676 = vsub.f32 %v494, %v564
  %v677 = vsub.f32 %v496, %v565
  %v678 = vsub.f32 %v499, %v566
  %v679 = vsub.f32 %v501, %v567
  %v680 = vsub.f32 %v504, %v568
  %v681 = vsub.f32 %v506, %v569
  %v682 = vsub.f32 %v509, %v570
  %v683 = vsub.f32 %v511, %v571
  %v684 = vsub.f32 %v514, %v572
  %v685 = vsub.f32 %v516, %v573
  %v686 = vsub.f32 %v519, %v574
  %v687 = vsub.f32 %v521, %v575
  %v688 = vsub.f32 %v524, %v576
  %v689 = vsub.f32 %v526, %v577
  %v690 = vadd.f32 %v658, 1e-05
  %v691 = vadd.f32 %v659, 1e-05
  %v692 = vadd.f32 %v660, 1e-05
  %v693 = vadd.f32 %v661, 1e-05
  %v694 = vadd.f32 %v662, 1e-05
  %v695 = vadd.f32 %v663, 1e-05
  %v696 = vadd.f32 %v664, 1e-05
  %v697 = vadd.f32 %v665, 1e-05
  %v698 = vadd.f32 %v666, 1e-05
  %v699 = vadd.f32 %v667, 1e-05
  %v700 = vadd.f32 %v668, 1e-05
  %v701 = vadd.f32 %v669, 1e-05
  %v702 = vadd.f32 %v670, 1e-05
  %v703 = vadd.f32 %v671, 1e-05
  %v704 = vadd.f32 %v672, 1e-05
  %v705 = vadd.f32 %v673, 1e-05
  %v706 = vrsqrt.pop %v690
  %v707 = vmul.f32 %v706, %v690
  %v708 = vmul.f32 %v707, %v706
  %v709 = vmul.f32 0.5, %v708
  %v710 = vsub.f32 1.5, %v709
  %v711 = vmul.f32 %v706, %v710
  %vm712 = vweird.f32 %v690
  %vm713 = vweird.f32 %v706
  %vm714 = vmor %vm712, %vm713
  %v715 = vsel %vm714, %v706, %v711
  %v716 = vrsqrt.pop %v691
  %v717 = vmul.f32 %v716, %v691
  %v718 = vmul.f32 %v717, %v716
  %v719 = vmul.f32 0.5, %v718
  %v720 = vsub.f32 1.5, %v719
  %v721 = vmul.f32 %v716, %v720
  %vm722 = vweird.f32 %v691
  %vm723 = vweird.f32 %v716
  %vm724 = vmor %vm722, %vm723
  %v725 = vsel %vm724, %v716, %v721
  %v726 = vrsqrt.pop %v692
  %v727 = vmul.f32 %v726, %v692
  %v728 = vmul.f32 %v727, %v726
  %v729 = vmul.f32 0.5, %v728
  %v730 = vsub.f32 1.5, %v729
  %v731 = vmul.f32 %v726, %v730
  %vm732 = vweird.f32 %v692
  %vm733 = vweird.f32 %v726
  %vm734 = vmor %vm732, %vm733
  %v735 = vsel %vm734, %v726, %v731
  %v736 = vrsqrt.pop %v693
  %v737 = vmul.f32 %v736, %v693
  %v738 = vmul.f32 %v737, %v736
  %v739 = vmul.f32 0.5, %v738
  %v740 = vsub.f32 1.5, %v739
  %v741 = vmul.f32 %v736, %v740
  %vm742 = vweird.f32 %v693
  %vm743 = vweird.f32 %v736
  %vm744 = vmor %vm742, %vm743
  %v745 = vsel %vm744, %v736, %v741
  %v746 = vrsqrt.pop %v694
  %v747 = vmul.f32 %v746, %v694
  %v748 = vmul.f32 %v747, %v746
  %v749 = vmul.f32 0.5, %v748
  %v750 = vsub.f32 1.5, %v749
  %v751 = vmul.f32 %v746, %v750
  %vm752 = vweird.f32 %v694
  %vm753 = vweird.f32 %v746
  %vm754 = vmor %vm752, %vm753
  %v755 = vsel %vm754, %v746, %v751
  %v756 = vrsqrt.pop %v695
  %v757 = vmul.f32 %v756, %v695
  %v758 = vmul.f32 %v757, %v756
  %v759 = vmul.f32 0.5, %v758
  %v760 = vsub.f32 1.5, %v759
  %v761 = vmul.f32 %v756, %v760
  %vm762 = vweird.f32 %v695
  %vm763 = vweird.f32 %v756
  %vm764 = vmor %vm762, %vm763
  %v765 = vsel %vm764, %v756, %v761
  %v766 = vrsqrt.pop %v696
  %v767 = vmul.f32 %v766, %v696
  %v768 = vmul.f32 %v767, %v766
  %v769 = vmul.f32 0.5, %v768
  %v770 = vsub.f32 1.5, %v769
  %v771 = vmul.f32 %v766, %v770
  %vm772 = vweird.f32 %v696
  %vm773 = vweird.f32 %v766
  %vm774 = vmor %vm772, %vm773
  %v775 = vsel %vm774, %v766, %v771
  %v776 = vrsqrt.pop %v697
  %v777 = vmul.f32 %v776, %v697
  %v778 = vmul.f32 %v777, %v776
  %v779 = vmul.f32 0.5, %v778
  %v780 = vsub.f32 1.5, %v779
  %v781 = vmul.f32 %v776, %v780
  %vm782 = vweird.f32 %v697
  %vm783 = vweird.f32 %v776
  %vm784 = vmor %vm782, %vm783
  %v785 = vsel %vm784, %v776, %v781
  %v786 = vrsqrt.pop %v698
  %v787 = vmul.f32 %v786, %v698
  %v788 = vmul.f32 %v787, %v786
  %v789 = vmul.f32 0.5, %v788
  %v790 = vsub.f32 1.5, %v789
  %v791 = vmul.f32 %v786, %v790
  %vm792 = vweird.f32 %v698
  %vm793 = vweird.f32 %v786
  %vm794 = vmor %vm792, %vm793
  %v795 = vsel %vm794, %v786, %v791
  %v796 = vrsqrt.pop %v699
  %v797 = vmul.f32 %v796, %v699
  %v798 = vmul.f32 %v797, %v796
  %v799 = vmul.f32 0.5, %v798
  %v800 = vsub.f32 1.5, %v799
  %v801 = vmul.f32 %v796, %v800
  %vm802 = vweird.f32 %v699
  %vm803 = vweird.f32 %v796
  %vm804 = vmor %vm802, %vm803
  %v805 = vsel %vm804, %v796, %v801
  %v806 = vrsqrt.pop %v700
  %v807 = vmul.f32 %v806, %v700
  %v808 = vmul.f32 %v807, %v806
  %v809 = vmul.f32 0.5, %v808
  %v810 = vsub.f32 1.5, %v809
  %v811 = vmul.f32 %v806, %v810
  %vm812 = vweird.f32 %v700
  %vm813 = vweird.f32 %v806
  %vm814 = vmor %vm812, %vm813
  %v815 = vsel %vm814, %v806, %v811
  %v816 = vrsqrt.pop %v701
  %v817 = vmul.f32 %v816, %v701
  %v818 = vmul.f32 %v817, %v816
  %v819 = vmul.f32 0.5, %v818
  %v820 = vsub.f32 1.5, %v819
  %v821 = vmul.f32 %v816, %v820
  %vm822 = vweird.f32 %v701
  %vm823 = vweird.f32 %v816
  %vm824 = vmor %vm822, %vm823
  %v825 = vsel %vm824, %v816, %v821
  %v826 = vrsqrt.pop %v702
  %v827 = vmul.f32 %v826, %v702
  %v828 = vmul.f32 %v827, %v826
  %v829 = vmul.f32 0.5, %v828
  %v830 = vsub.f32 1.5, %v829
  %v831 = vmul.f32 %v826, %v830
  %vm832 = vweird.f32 %v702
  %vm833 = vweird.f32 %v826
  %vm834 = vmor %vm832, %vm833
  %v835 = vsel %vm834, %v826, %v831
  %v836 = vrsqrt.pop %v703
  %v837 = vmul.f32 %v836, %v703
  %v838 = vmul.f32 %v837, %v836
  %v839 = vmul.f32 0.5, %v838
  %v840 = vsub.f32 1.5, %v839
  %v841 = vmul.f32 %v836, %v840
  %vm842 = vweird.f32 %v703
  %vm843 = vweird.f32 %v836
  %vm844 = vmor %vm842, %vm843
  %v845 = vsel %vm844, %v836, %v841
  %v846 = vrsqrt.pop %v704
  %v847 = vmul.f32 %v846, %v704
  %v848 = vmul.f32 %v847, %v846
  %v849 = vmul.f32 0.5, %v848
  %v850 = vsub.f32 1.5, %v849
  %v851 = vmul.f32 %v846, %v850
  %vm852 = vweird.f32 %v704
  %vm853 = vweird.f32 %v846
  %vm854 = vmor %vm852, %vm853
  %v855 = vsel %vm854, %v846, %v851
  %v856 = vrsqrt.pop %v705
  %v857 = vmul.f32 %v856, %v705
  %v858 = vmul.f32 %v857, %v856
  %v859 = vmul.f32 0.5, %v858
  %v860 = vsub.f32 1.5, %v859
  %v861 = vmul.f32 %v856, %v860
  %vm862 = vweird.f32 %v705
  %vm863 = vweird.f32 %v856
  %vm864 = vmor %vm862, %vm863
  %v865 = vsel %vm864, %v856, %v861
  %v866 = vmul.f32 %v674, %v715
  %v867 = vmul.f32 %v675, %v725
  %v868 = vmul.f32 %v676, %v735
  %v869 = vmul.f32 %v677, %v745
  %v870 = vmul.f32 %v678, %v755
  %v871 = vmul.f32 %v679, %v765
  %v872 = vmul.f32 %v680, %v775
  %v873 = vmul.f32 %v681, %v785
  %v874 = vmul.f32 %v682, %v795
  %v875 = vmul.f32 %v683, %v805
  %v876 = vmul.f32 %v684, %v815
  %v877 = vmul.f32 %v685, %v825
  %v878 = vmul.f32 %v686, %v835
  %v879 = vmul.f32 %v687, %v845
  %v880 = vmul.f32 %v688, %v855
  %v881 = vmul.f32 %v689, %v865
  %v882 = vperm.slane %v528, 0
  %v883 = vmul.f32 %v866, %v882
  %v884 = vmul.f32 %v867, %v882
  %v885 = vmul.f32 %v868, %v882
  %v886 = vmul.f32 %v869, %v882
  %v887 = vmul.f32 %v870, %v882
  %v888 = vmul.f32 %v871, %v882
  %v889 = vmul.f32 %v872, %v882
  %v890 = vmul.f32 %v873, %v882
  %v891 = vmul.f32 %v874, %v882
  %v892 = vmul.f32 %v875, %v882
  %v893 = vmul.f32 %v876, %v882
  %v894 = vmul.f32 %v877, %v882
  %v895 = vmul.f32 %v878, %v882
  %v896 = vmul.f32 %v879, %v882
  %v897 = vmul.f32 %v880, %v882
  %v898 = vmul.f32 %v881, %v882
  %v899 = vperm.slane %v529, 0
  %v900 = vadd.f32 %v883, %v899
  %v901 = vadd.f32 %v884, %v899
  %v902 = vadd.f32 %v885, %v899
  %v903 = vadd.f32 %v886, %v899
  %v904 = vadd.f32 %v887, %v899
  %v905 = vadd.f32 %v888, %v899
  %v906 = vadd.f32 %v889, %v899
  %v907 = vadd.f32 %v890, %v899
  %v908 = vadd.f32 %v891, %v899
  %v909 = vadd.f32 %v892, %v899
  %v910 = vadd.f32 %v893, %v899
  %v911 = vadd.f32 %v894, %v899
  %v912 = vadd.f32 %v895, %v899
  %v913 = vadd.f32 %v896, %v899
  %v914 = vadd.f32 %v897, %v899
  %v915 = vadd.f32 %v898, %v899
  %916 = vst [vmem:[%s5] sm:$0xff] %v900
  %917 = vst [vmem:[%s5 + $0x8] sm:$0xff] %v901
  %918 = vst [vmem:[%s5 + $0x10] sm:$0xff] %v902
  %919 = vst [vmem:[%s5 + $0x18] sm:$0xff] %v903
  %920 = vst [vmem:[%s5 + $0x20] sm:$0xff] %v904
  %921 = vst [vmem:[%s5 + $0x28] sm:$0xff] %v905
  %922 = vst [vmem:[%s5 + $0x30] sm:$0xff] %v906
  %923 = vst [vmem:[%s5 + $0x38] sm:$0xff] %v907
  %924 = vst [vmem:[%s5 + $0x40] sm:$0xff] %v908
  %925 = vst [vmem:[%s5 + $0x48] sm:$0xff] %v909
  %926 = vst [vmem:[%s5 + $0x50] sm:$0xff] %v910
  %927 = vst [vmem:[%s5 + $0x58] sm:$0xff] %v911
  %928 = vst [vmem:[%s5 + $0x60] sm:$0xff] %v912
  %929 = vst [vmem:[%s5 + $0x68] sm:$0xff] %v913
  %930 = vst [vmem:[%s5 + $0x70] sm:$0xff] %v914
  %931 = vst [vmem:[%s5 + $0x78] sm:$0xff] %v915
  // Predicated region
  $region22: #{mlp_forward.1} parent=0 // pred_check
    _
  $region23: #{mlp_forward.1} parent=0 // pred_check_branch
    %933 = sbr.rel (0) target = $region25
  $region24: #{mlp_forward.1} parent=0 // pred_region
    _
  $region25: #{mlp_forward.1} parent=0 // pred_fallthru
    _
  // Predicated region
  $region26: #{mlp_forward.1} parent=0 // pred_check
    _
  $region27: #{mlp_forward.1} parent=0 // pred_check_branch
    %935 = sbr.rel (0) target = $region29
  $region28: #{mlp_forward.1} parent=0 // pred_region
    _
  $region29: #{mlp_forward.1} parent=0 // pred_fallthru
    _

</llo_original>
